<compile_context>
chip_gen: v5e
topology: v5e:2x2
jax: 0.10.0
libtpu: 0.0.40
codegen_flags: <defaults>
</compile_context>

<pallas_src>
import jax
import jax.numpy as jnp
from jax.experimental import pallas as pl
from jax.experimental.pallas import tpu as pltpu


_INV_SQRT2 = 0.7071067811865476


def _erf(z):
    """erf via Abramowitz & Stegun 7.1.26 (max abs err ~1.5e-7), fp32."""
    a1 = 0.254829592
    a2 = -0.284496736
    a3 = 1.421413741
    a4 = -1.453152027
    a5 = 1.061405429
    p = 0.3275911
    za = jnp.abs(z)
    t = 1.0 / (1.0 + p * za)
    poly = ((((a5 * t + a4) * t + a3) * t + a2) * t + a1) * t
    y = 1.0 - poly * jnp.exp(-za * za)
    return jnp.where(z < 0, -y, y)


def _gelu_exact(x):
    # PyTorch nn.GELU() default: 0.5 * x * (1 + erf(x / sqrt(2)))
    return 0.5 * x * (1.0 + _erf(x * _INV_SQRT2))


# ----------------------------------------------------------------------------
# Fused MLP kernel.
# Grid: (M tiles ["parallel"], Dh tiles ["arbitrary" reduction]).
#   x_ref:  (tm, Din)     w1_ref: (Din, tdh)   b1_ref: (1, tdh)
#   w2_ref: (tdh, Dout)   b2_ref: (1, Dout)    o_ref:  (tm, Dout)
#   acc_ref: fp32 (tm, Dout) scratch, persists across the Dh axis.
# ----------------------------------------------------------------------------
def _mlp_kernel(x_ref, w1_ref, b1_ref, w2_ref, b2_ref, o_ref, acc_ref):
    j = pl.program_id(1)

    @pl.when(j == 0)
    def _():
        acc_ref[...] = jnp.zeros_like(acc_ref)

    h = jnp.dot(x_ref[...], w1_ref[...], preferred_element_type=jnp.float32)
    h = h + b1_ref[...].astype(jnp.float32)
    h = _gelu_exact(h)                       # exact erf GELU, fp32
    # Dropout(p=0.0) / eval mode is the identity -> nothing to do.
    h = h.astype(w2_ref.dtype)               # back to operand dtype for MXU
    acc_ref[...] += jnp.dot(h, w2_ref[...], preferred_element_type=jnp.float32)

    @pl.when(j == pl.num_programs(1) - 1)
    def _():
        y = acc_ref[...] + b2_ref[...].astype(jnp.float32)
        o_ref[...] = y.astype(o_ref.dtype)


def _round_up(x, m):
    return pl.cdiv(x, m) * m


def _pick_hidden_tile(dh, target):
    """Largest multiple of 128 that divides dh and is <= target (lane-dense,
    no ragged Dh tiles — ragged reduction tiles would corrupt the acc)."""
    if dh <= target:
        return dh
    t = (target // 128) * 128
    while t >= 128:
        if dh % t == 0:
            return t
        t -= 128
    return dh  # no clean divisor: keep the whole hidden dim resident


def prepare_mlp_params(fc1_w, fc1_b, fc2_w, fc2_b):
    """One-time parameter prep (hoisted out of the per-call path).

    PyTorch layout in:  fc1_w (Dh, Din), fc1_b (Dh,), fc2_w (Dout, Dh), fc2_b (Dout,)
    Kernel layout out:  w1t (Din, Dh), b1 (1, Dh), w2t (Dh, Dout), b2 (1, Dout)
    """
    dh, _ = fc1_w.shape
    dout = fc2_w.shape[0]
    return (jnp.transpose(fc1_w), fc1_b.reshape(1, dh),
            jnp.transpose(fc2_w), fc2_b.reshape(1, dout))


def mlp_forward(x, w1t, b1, w2t, b2, *, block_m=256, block_h=512):
    """Fused Mlp forward matching PyTorch semantics (eval / drop=0.0).

    x:   (..., Din)
    w1t: (Din, Dh)   b1: (1, Dh)   (pre-transposed, see prepare_mlp_params)
    w2t: (Dh, Dout)  b2: (1, Dout)
    returns (..., Dout).  Pass bf16 operands for the fast MXU path.
    """
    *lead, din = x.shape
    dh = w1t.shape[1]
    dout = w2t.shape[1]
    assert w1t.shape == (din, dh), w1t.shape
    assert w2t.shape == (dh, dout), w2t.shape
    b1 = b1.reshape(1, dh)
    b2 = b2.reshape(1, dout)

    m = 1
    for d in lead:
        m *= int(d)
    x2 = x.reshape(m, din)

    # --- Row tile (M axis): large, VMEM-limited, dtype-aware sublane rounding.
    sub = 16 if x.dtype.itemsize == 2 else 8
    tm = block_m
    if m >= 2 * sub and pl.cdiv(m, tm) < 2:
        # Small M: split into >=2 tiles so both v7x TensorCores get work.
        tm = _round_up(pl.cdiv(m, 2), sub)
    tm = min(tm, _round_up(m, sub))
    if tm >= m:
        tm = m  # single full-extent tile (always a legal block shape)
    grid_m = pl.cdiv(m, tm)  # ragged last tile handled by Pallas

    # --- Hidden tile (Dh axis): bounds resident weight VMEM per step.
    tdh = _pick_hidden_tile(dh, block_h)
    grid_h = dh // tdh

    # --- Explicit VMEM budget (scoped default is only 16/32 MiB).
    xb = x.dtype.itemsize
    wb = w1t.dtype.itemsize
    vmem_est = (2 * tm * din * xb                        # x tiles (dbl-buf)
                + 2 * (din * tdh + tdh * dout) * wb      # weight slices (dbl-buf)
                + 2 * (tdh + dout) * wb                  # bias slices
                + 2 * tm * dout * xb                     # output tiles (dbl-buf)
                + tm * dout * 4                          # fp32 accumulator
                + 2 * tm * tdh * 4)                      # hidden + erf temporaries
    vmem_limit = int(min(max(int(1.25 * vmem_est) + (2 << 20), 32 << 20), 64 << 20))

    cost = pl.CostEstimate(
        flops=2 * m * (din * dh + dh * dout),
        transcendentals=m * dh,
        bytes_accessed=(m * din * xb + (din * dh + dh * dout) * wb
                        + (dh + dout) * wb + m * dout * xb),
    )

    out = pl.pallas_call(
        _mlp_kernel,
        out_shape=jax.ShapeDtypeStruct((m, dout), x.dtype),
        grid=(grid_m, grid_h),
        in_specs=[
            pl.BlockSpec((tm, din), lambda i, j: (i, 0)),
            pl.BlockSpec((din, tdh), lambda i, j: (0, j)),
            pl.BlockSpec((1, tdh), lambda i, j: (0, j)),
            pl.BlockSpec((tdh, dout), lambda i, j: (j, 0)),
            pl.BlockSpec((1, dout), lambda i, j: (0, 0)),
        ],
        out_specs=pl.BlockSpec((tm, dout), lambda i, j: (i, 0)),
        scratch_shapes=[pltpu.VMEM((tm, dout), jnp.float32)],
        compiler_params=pltpu.CompilerParams(
            dimension_semantics=("parallel", "arbitrary"),
            vmem_limit_bytes=vmem_limit),
        cost_estimate=cost,
    )(x2, w1t, b1, w2t, b2)

    return out.reshape(*lead, dout)


# ----------------------------------------------------------------------------
# Pure-JAX reference (PyTorch-exact GELU) for correctness checking.
# ----------------------------------------------------------------------------
def _ref_mlp(x, fc1_w, fc1_b, fc2_w, fc2_b):
    hi = jax.lax.Precision.HIGHEST
    h = jnp.dot(x, fc1_w.T, precision=hi) + fc1_b
    h = jax.nn.gelu(h, approximate=False)     # exact erf GELU (PyTorch default)
    return jnp.dot(h, fc2_w.T, precision=hi) + fc2_b


if __name__ == "__main__":
    key = jax.random.PRNGKey(0)

    # Small, lane-friendly shapes: (batch, seq, features).
    B, N, Din, Dh, Dout = 2, 64, 128, 256, 128

    ks = jax.random.split(key, 5)
    x = jax.random.normal(ks[0], (B, N, Din), jnp.float32)
    fc1_w = 0.05 * jax.random.normal(ks[1], (Dh, Din), jnp.float32)
    fc1_b = 0.10 * jax.random.normal(ks[2], (Dh,), jnp.float32)
    fc2_w = 0.05 * jax.random.normal(ks[3], (Dout, Dh), jnp.float32)
    fc2_b = 0.10 * jax.random.normal(ks[4], (Dout,), jnp.float32)

    # One-time parameter prep (hoisted transposes / reshapes).
    w1t, b1r, w2t, b2r = prepare_mlp_params(fc1_w, fc1_b, fc2_w, fc2_b)

    fwd = jax.jit(mlp_forward)
    out = jax.block_until_ready(fwd(x, w1t, b1r, w2t, b2r))
    assert out.shape == (B, N, Dout), out.shape

    ref = jax.block_until_ready(_ref_mlp(x, fc1_w, fc1_b, fc2_w, fc2_b))
    max_err = float(jnp.max(jnp.abs(out - ref)))
    assert jnp.allclose(out, ref, rtol=1e-3, atol=1e-3), max_err

    print("KERNEL_OK")
</pallas_src>

<mosaic_0001>
module attributes {stable_mosaic.version = 11 : i64} {
  func.func @_mlp_kernel(%arg0: i32, %arg1: i32, %arg2: memref<64x128xf32, #tpu.memory_space<vmem>>, %arg3: memref<128x256xf32, #tpu.memory_space<vmem>>, %arg4: memref<1x256xf32, #tpu.memory_space<vmem>>, %arg5: memref<256x128xf32, #tpu.memory_space<vmem>>, %arg6: memref<1x128xf32, #tpu.memory_space<vmem>>, %arg7: memref<64x128xf32, #tpu.memory_space<vmem>>, %arg8: memref<64x128xf32, #tpu.memory_space<vmem>>) attributes {dimension_semantics = [#tpu.dimension_semantics<parallel>, #tpu.dimension_semantics<arbitrary>], iteration_bounds = array<i64: 2, 1>, scalar_prefetch = 0 : i64, scratch_operands = 1 : i64, tpu.core_type = #tpu.core_type<tc>, window_params = [{transform_indices = @transform_0, window_bounds = array<i64: 64, 128>}, {transform_indices = @transform_1, window_bounds = array<i64: 128, 256>}, {transform_indices = @transform_2, window_bounds = array<i64: 1, 256>}, {transform_indices = @transform_3, window_bounds = array<i64: 256, 128>}, {pipeline_mode = #tpu.pipeline_mode<synchronous>, transform_indices = @transform_4, window_bounds = array<i64: 1, 128>}, {transform_indices = @transform_5, window_bounds = array<i64: 64, 128>}]} {
    %c0_i32 = arith.constant 0 : i32
    %0 = arith.cmpi eq, %arg1, %c0_i32 : i32
    %1 = arith.extui %0 : i1 to i32
    %c0_i32_0 = arith.constant 0 : i32
    %2 = arith.cmpi ne, %1, %c0_i32_0 : i32
    scf.if %2 {
      %cst_30 = arith.constant 0.000000e+00 : f32
      %57 = vector.broadcast %cst_30 : f32 to vector<64x128xf32>
      %c0_31 = arith.constant 0 : index
      %c0_32 = arith.constant 0 : index
      %58 = vector.load %arg8[%c0_31, %c0_32] : memref<64x128xf32, #tpu.memory_space<vmem>>, vector<64x128xf32>
      tpu.vector_store %arg8[%c0_31, %c0_32], %57 {strides = array<i32>} : memref<64x128xf32, #tpu.memory_space<vmem>>, vector<64x128xf32>,
    } else {
    }
    %c0 = arith.constant 0 : index
    %c0_1 = arith.constant 0 : index
    %3 = vector.load %arg2[%c0, %c0_1] : memref<64x128xf32, #tpu.memory_space<vmem>>, vector<64x128xf32>
    %c0_2 = arith.constant 0 : index
    %c0_3 = arith.constant 0 : index
    %4 = vector.load %arg3[%c0_2, %c0_3] : memref<128x256xf32, #tpu.memory_space<vmem>>, vector<128x256xf32>
    %cst = arith.constant dense<0.000000e+00> : vector<64x256xf32>
    %5 = tpu.matmul %3, %4, %cst {dimension_numbers = #tpu.dot_dimension_numbers<[1], [0], [0], [1], [0, 0, 1, 1], [], []>} : vector<64x128xf32>, vector<128x256xf32>, vector<64x256xf32> -> vector<64x256xf32>
    %c0_4 = arith.constant 0 : index
    %c0_5 = arith.constant 0 : index
    %6 = vector.load %arg4[%c0_4, %c0_5] : memref<1x256xf32, #tpu.memory_space<vmem>>, vector<1x256xf32>
    %7 = vector.broadcast %6 : vector<1x256xf32> to vector<64x256xf32>
    %8 = arith.addf %5, %7 : vector<64x256xf32>
    %cst_6 = arith.constant 5.000000e-01 : f32
    %9 = vector.broadcast %cst_6 : f32 to vector<64x256xf32>
    %10 = arith.mulf %9, %8 : vector<64x256xf32>
    %cst_7 = arith.constant 0.707106769 : f32
    %11 = vector.broadcast %cst_7 : f32 to vector<64x256xf32>
    %12 = arith.mulf %8, %11 : vector<64x256xf32>
    %13 = math.absf %12 : vector<64x256xf32>
    %cst_8 = arith.constant 0.327591091 : f32
    %14 = vector.broadcast %cst_8 : f32 to vector<64x256xf32>
    %15 = arith.mulf %14, %13 : vector<64x256xf32>
    %cst_9 = arith.constant 1.000000e+00 : f32
    %16 = vector.broadcast %cst_9 : f32 to vector<64x256xf32>
    %17 = arith.addf %16, %15 : vector<64x256xf32>
    %cst_10 = arith.constant 1.000000e+00 : f32
    %18 = vector.broadcast %cst_10 : f32 to vector<64x256xf32>
    %19 = arith.divf %18, %17 : vector<64x256xf32>
    %cst_11 = arith.constant 1.06140542 : f32
    %20 = vector.broadcast %cst_11 : f32 to vector<64x256xf32>
    %21 = arith.mulf %20, %19 : vector<64x256xf32>
    %cst_12 = arith.constant -1.45315206 : f32
    %22 = vector.broadcast %cst_12 : f32 to vector<64x256xf32>
    %23 = arith.addf %21, %22 : vector<64x256xf32>
    %24 = arith.mulf %23, %19 : vector<64x256xf32>
    %cst_13 = arith.constant 1.42141378 : f32
    %25 = vector.broadcast %cst_13 : f32 to vector<64x256xf32>
    %26 = arith.addf %24, %25 : vector<64x256xf32>
    %27 = arith.mulf %26, %19 : vector<64x256xf32>
    %cst_14 = arith.constant -0.284496725 : f32
    %28 = vector.broadcast %cst_14 : f32 to vector<64x256xf32>
    %29 = arith.addf %27, %28 : vector<64x256xf32>
    %30 = arith.mulf %29, %19 : vector<64x256xf32>
    %cst_15 = arith.constant 0.254829586 : f32
    %31 = vector.broadcast %cst_15 : f32 to vector<64x256xf32>
    %32 = arith.addf %30, %31 : vector<64x256xf32>
    %33 = arith.mulf %32, %19 : vector<64x256xf32>
    %cst_16 = arith.constant 0.000000e+00 : f32
    %34 = vector.broadcast %cst_16 : f32 to vector<64x256xf32>
    %35 = arith.subf %34, %13 : vector<64x256xf32>
    %36 = arith.mulf %35, %13 : vector<64x256xf32>
    %37 = math.exp %36 : vector<64x256xf32>
    %38 = arith.mulf %33, %37 : vector<64x256xf32>
    %cst_17 = arith.constant 1.000000e+00 : f32
    %39 = vector.broadcast %cst_17 : f32 to vector<64x256xf32>
    %40 = arith.subf %39, %38 : vector<64x256xf32>
    %cst_18 = arith.constant 0.000000e+00 : f32
    %41 = vector.broadcast %cst_18 : f32 to vector<64x256xf32>
    %42 = arith.cmpf olt, %12, %41 : vector<64x256xf32>
    %cst_19 = arith.constant 0.000000e+00 : f32
    %43 = vector.broadcast %cst_19 : f32 to vector<64x256xf32>
    %44 = arith.subf %43, %40 : vector<64x256xf32>
    %45 = arith.select %42, %44, %40 : vector<64x256xi1>, vector<64x256xf32>
    %cst_20 = arith.constant 1.000000e+00 : f32
    %46 = vector.broadcast %cst_20 : f32 to vector<64x256xf32>
    %47 = arith.addf %46, %45 : vector<64x256xf32>
    %48 = arith.mulf %10, %47 : vector<64x256xf32>
    %c0_21 = arith.constant 0 : index
    %c0_22 = arith.constant 0 : index
    %49 = vector.load %arg8[%c0_21, %c0_22] : memref<64x128xf32, #tpu.memory_space<vmem>>, vector<64x128xf32>
    %c0_23 = arith.constant 0 : index
    %c0_24 = arith.constant 0 : index
    %50 = vector.load %arg5[%c0_23, %c0_24] : memref<256x128xf32, #tpu.memory_space<vmem>>, vector<256x128xf32>
    %cst_25 = arith.constant dense<0.000000e+00> : vector<64x128xf32>
    %51 = tpu.matmul %48, %50, %cst_25 {dimension_numbers = #tpu.dot_dimension_numbers<[1], [0], [0], [1], [0, 0, 1, 1], [], []>} : vector<64x256xf32>, vector<256x128xf32>, vector<64x128xf32> -> vector<64x128xf32>
    %52 = arith.addf %49, %51 : vector<64x128xf32>
    %c0_26 = arith.constant 0 : index
    %c0_27 = arith.constant 0 : index
    %53 = vector.load %arg8[%c0_26, %c0_27] : memref<64x128xf32, #tpu.memory_space<vmem>>, vector<64x128xf32>
    tpu.vector_store %arg8[%c0_26, %c0_27], %52 {strides = array<i32>} : memref<64x128xf32, #tpu.memory_space<vmem>>, vector<64x128xf32>,
    %c0_i32_28 = arith.constant 0 : i32
    %54 = arith.cmpi eq, %arg1, %c0_i32_28 : i32
    %55 = arith.extui %54 : i1 to i32
    %c0_i32_29 = arith.constant 0 : i32
    %56 = arith.cmpi ne, %55, %c0_i32_29 : i32
    scf.if %56 {
      %c0_30 = arith.constant 0 : index
      %c0_31 = arith.constant 0 : index
      %57 = vector.load %arg8[%c0_30, %c0_31] : memref<64x128xf32, #tpu.memory_space<vmem>>, vector<64x128xf32>
      %c0_32 = arith.constant 0 : index
      %c0_33 = arith.constant 0 : index
      %58 = vector.load %arg6[%c0_32, %c0_33] : memref<1x128xf32, #tpu.memory_space<vmem>>, vector<1x128xf32>
      %59 = vector.broadcast %58 : vector<1x128xf32> to vector<64x128xf32>
      %60 = arith.addf %57, %59 : vector<64x128xf32>
      %c0_34 = arith.constant 0 : index
      %c0_35 = arith.constant 0 : index
      %61 = vector.load %arg7[%c0_34, %c0_35] : memref<64x128xf32, #tpu.memory_space<vmem>>, vector<64x128xf32>
      tpu.vector_store %arg7[%c0_34, %c0_35], %60 {strides = array<i32>} : memref<64x128xf32, #tpu.memory_space<vmem>>, vector<64x128xf32>,
    } else {
    }
    return
  }
  func.func @transform_0(%arg0: i32, %arg1: i32) -> (i32, i32) {
    %c0_i32 = arith.constant 0 : i32
    %c0_i32_0 = arith.constant 0 : i32
    return %arg0, %c0_i32 : i32, i32
  }
  func.func @transform_1(%arg0: i32, %arg1: i32) -> (i32, i32) {
    %c0_i32 = arith.constant 0 : i32
    %c0_i32_0 = arith.constant 0 : i32
    return %c0_i32, %arg1 : i32, i32
  }
  func.func @transform_2(%arg0: i32, %arg1: i32) -> (i32, i32) {
    %c0_i32 = arith.constant 0 : i32
    %c0_i32_0 = arith.constant 0 : i32
    return %c0_i32, %arg1 : i32, i32
  }
  func.func @transform_3(%arg0: i32, %arg1: i32) -> (i32, i32) {
    %c0_i32 = arith.constant 0 : i32
    %c0_i32_0 = arith.constant 0 : i32
    return %arg1, %c0_i32 : i32, i32
  }
  func.func @transform_4(%arg0: i32, %arg1: i32) -> (i32, i32) {
    %c0_i32 = arith.constant 0 : i32
    %c0_i32_0 = arith.constant 0 : i32
    %c0_i32_1 = arith.constant 0 : i32
    return %c0_i32, %c0_i32_0 : i32, i32
  }
  func.func @transform_5(%arg0: i32, %arg1: i32) -> (i32, i32) {
    %c0_i32 = arith.constant 0 : i32
    %c0_i32_0 = arith.constant 0 : i32
    return %arg0, %c0_i32 : i32, i32
  }
}

</mosaic_0001>

<llo_original>
// kernel: mlp_forward.1
$region0: #{mlp_forward.1}
  #allocation0 [shape = 'u32[]', space=smem, size = 0x4, offset = 0x4, fixed_abs, tag = 'smem constant byte address 0x4 - core index']
  #allocation1 [shape = 'u32[72,128]{1,0:T(1,128)}', space=vmem, size = 0x9000, scoped, tag = 'internal scratch']
  #allocation2 [shape = 'f32[64,128]{1,0:T(8,128)}', space=vmem, size = 0x8000, scoped, tag = 'scratch operand']
  %s0 = inlined_call_operand.hbm [shape: f32[128,128], index: 0, kind: input, shape index: {}]
  %s1 = inlined_call_operand.hbm [shape: f32[128,256], index: 1, kind: input, shape index: {}]
  %s2 = inlined_call_operand.vmem [shape: f32[1,256], index: 2, kind: input, shape index: {}]
  %s3 = inlined_call_operand.hbm [shape: f32[256,128], index: 3, kind: input, shape index: {}]
  %s4 = inlined_call_operand.vmem [shape: f32[1,128], index: 4, kind: input, shape index: {}]
  %s5 = inlined_call_operand.hbm [shape: f32[128,128], index: 5, kind: output, shape index: {}]
  %s6 = sld [smem:[#allocation0]]
  $region73: #{mlp_forward.1} parent=0
    _
  %s8 = ssub.s32 1, %s6
  %s9 = scalar_select 0, %s8, %s6
  $region1: #{mlp_forward.1} parent=0
    #allocation3 [shape = 'u8[65536]{0}', space=vmem, size = 0x10000, scoped, tag = 'input window, operand 0']
    #allocation4 [shape = 's32[2]{0}', space=sflag, size = 0x8, scoped, tag = 'scoped memory for mlp_forward.1']
    #allocation5 [shape = 's32[2]{0}', space=sflag, size = 0x8, scoped, tag = 'scoped memory for mlp_forward.1']
    #allocation6 [shape = 'u8[131072]{0}', space=vmem, size = 0x20000, scoped, tag = 'input window, operand 1, single buffered']
    #allocation7 [shape = 's32[1]{0}', space=sflag, size = 0x4, scoped, tag = 'scoped memory for mlp_forward.1']
    #allocation8 [shape = 'u8[131072]{0}', space=vmem, size = 0x20000, scoped, tag = 'input window, operand 3, single buffered']
    #allocation9 [shape = 'u8[65536]{0}', space=vmem, size = 0x10000, scoped, tag = 'output window, operand 0']
    %10 = vsyncpa [#allocation4], 0
    %s11 = scalar_lea.sflag [#allocation4], 1
    %12 = vsyncpa %s11, 0
    %13 = vsyncpa [#allocation7], 0
    %14 = vsyncpa [#allocation5], 0
    %s15 = scalar_lea.sflag [#allocation5], 1
    %16 = vsyncpa %s15, 0
    loop: start=0, step=1, limit=4
    $region2: #{mlp_forward.1} parent=1 // loop_pre_header
      _
    $region3: #{mlp_forward.1} parent=1 // loop_header
      %s18 = sphi 0, %s22
      %p19 = scmp.ge.s32.totalorder %s18, 4
      %s25 = sphi 0, %s37
      %s26 = sphi 0, %s33
      %s27 = sphi 0, %s25
      %s28 = sphi 0, %s26
      %s29 = sphi 0, %s27
      %s30 = sphi 0, %s28
      %s40 = sphi 0, %s42
      %s43 = sphi 0, %s40
      %s44 = sphi 0, %s43
      %s60 = sphi 0, %s44
      %s66 = sphi 0, %s68
      %s69 = sphi 0, %s66
      %s70 = sphi 0, %s69
      %s86 = sphi 0, %s70
      %s92 = sphi 0, %s94
      %s95 = sphi 0, %s92
      %s96 = sphi 0, %s95
      %s112 = sphi 0, %s96
      %s118 = sphi 0, %s120
      %s121 = sphi 0, %s118
      %s122 = sphi 0, %s121
      %s138 = sphi 0, %s122
      %s142 = sphi 0, %s142
      %s144 = sphi 0, %s142
      %s145 = sphi 0, %s144
      %s159 = sphi 0, %s145
      %s165 = sphi 0, %s167
      %s168 = sphi 0, %s165
      %s169 = sphi 0, %s168
      %s185 = sphi 0, %s169
    $region4: #{mlp_forward.1} parent=1 // loop_header_branch
      %21 = sbr.rel (%p19) target = $region8
    $region5: #{mlp_forward.1} parent=1 // loop_body
      %s23 = ssub.s32 %s18, 1
      %s24 = ssub.s32 %s18, 2
      %s31 = sadd.s32 1, %s26
      %p32 = scmp.ge.s32.totalorder %s31, 1
      %s33 = scalar_select %p32, 0, %s31
      %s34 = sadd.s32 1, %s25
      %s35 = scalar_select %p32, %s34, %s25
      %p36 = scmp.ge.s32.totalorder %s35, 2
      %s37 = scalar_select %p36, 0, %s35
      %s38 = ssub.s32 %s25, %s37
      %p39 = scmp.eq.s32.totalorder %s38, 0
      %s41 = sadd.s32 %s40, 1
      %s42 = scalar_select %p39, %s40, %s41
      %p45 = pneg %p39
      %p46 = scmp.eq.s32.totalorder %s18, 1
      %p47 = por %p45, %p46
      %p48 = scmp.ne.s32.totalorder %s40, %s43
      %p49 = scmp.eq.s32.totalorder %s18, 0
      %p50 = por %p48, %p49
      %p51 = scmp.ne.s32.totalorder %s40, %s43
      %p52 = scmp.eq.s32.totalorder %s23, 1
      %p53 = por %p51, %p52
      %p54 = scmp.ne.s32.totalorder %s43, %s44
      %p55 = scmp.eq.s32.totalorder %s23, 0
      %p56 = por %p54, %p55
      %p57 = scmp.ne.s32.totalorder %s43, %s44
      %p58 = scmp.eq.s32.totalorder %s24, 1
      %p59 = por %p57, %p58
      %p61 = scmp.ne.s32.totalorder %s44, %s60
      %p62 = scmp.eq.s32.totalorder %s24, 0
      %p63 = por %p61, %p62
      %s64 = ssub.s32 %s26, %s33
      %p65 = scmp.eq.s32.totalorder %s64, 0
      %s67 = sadd.s32 %s66, 1
      %s68 = scalar_select %p65, %s66, %s67
      %p71 = pneg %p65
      %p72 = scmp.eq.s32.totalorder %s18, 1
      %p73 = por %p71, %p72
      %p74 = scmp.ne.s32.totalorder %s66, %s69
      %p75 = scmp.eq.s32.totalorder %s18, 0
      %p76 = por %p74, %p75
      %p77 = scmp.ne.s32.totalorder %s66, %s69
      %p78 = scmp.eq.s32.totalorder %s23, 1
      %p79 = por %p77, %p78
      %p80 = scmp.ne.s32.totalorder %s69, %s70
      %p81 = scmp.eq.s32.totalorder %s23, 0
      %p82 = por %p80, %p81
      %p83 = scmp.ne.s32.totalorder %s69, %s70
      %p84 = scmp.eq.s32.totalorder %s24, 1
      %p85 = por %p83, %p84
      %p87 = scmp.ne.s32.totalorder %s70, %s86
      %p88 = scmp.eq.s32.totalorder %s24, 0
      %p89 = por %p87, %p88
      %s90 = ssub.s32 %s26, %s33
      %p91 = scmp.eq.s32.totalorder %s90, 0
      %s93 = sadd.s32 %s92, 1
      %s94 = scalar_select %p91, %s92, %s93
      %p97 = pneg %p91
      %p98 = scmp.eq.s32.totalorder %s18, 1
      %p99 = por %p97, %p98
      %p100 = scmp.ne.s32.totalorder %s92, %s95
      %p101 = scmp.eq.s32.totalorder %s18, 0
      %p102 = por %p100, %p101
      %p103 = scmp.ne.s32.totalorder %s92, %s95
      %p104 = scmp.eq.s32.totalorder %s23, 1
      %p105 = por %p103, %p104
      %p106 = scmp.ne.s32.totalorder %s95, %s96
      %p107 = scmp.eq.s32.totalorder %s23, 0
      %p108 = por %p106, %p107
      %p109 = scmp.ne.s32.totalorder %s95, %s96
      %p110 = scmp.eq.s32.totalorder %s24, 1
      %p111 = por %p109, %p110
      %p113 = scmp.ne.s32.totalorder %s96, %s112
      %p114 = scmp.eq.s32.totalorder %s24, 0
      %p115 = por %p113, %p114
      %s116 = ssub.s32 %s26, %s33
      %p117 = scmp.eq.s32.totalorder %s116, 0
      %s119 = sadd.s32 %s118, 1
      %s120 = scalar_select %p117, %s118, %s119
      %p123 = pneg %p117
      %p124 = scmp.eq.s32.totalorder %s18, 1
      %p125 = por %p123, %p124
      %p126 = scmp.ne.s32.totalorder %s118, %s121
      %p127 = scmp.eq.s32.totalorder %s18, 0
      %p128 = por %p126, %p127
      %p129 = scmp.ne.s32.totalorder %s118, %s121
      %p130 = scmp.eq.s32.totalorder %s23, 1
      %p131 = por %p129, %p130
      %p132 = scmp.ne.s32.totalorder %s121, %s122
      %p133 = scmp.eq.s32.totalorder %s23, 0
      %p134 = por %p132, %p133
      %p135 = scmp.ne.s32.totalorder %s121, %s122
      %p136 = scmp.eq.s32.totalorder %s24, 1
      %p137 = por %p135, %p136
      %p139 = scmp.ne.s32.totalorder %s122, %s138
      %p140 = scmp.eq.s32.totalorder %s24, 0
      %p141 = por %p139, %p140
      %s143 = sadd.s32 %s142, 1
      %p146 = scmp.eq.s32.totalorder %s18, 1
      %p147 = scmp.ne.s32.totalorder %s142, %s144
      %p148 = scmp.eq.s32.totalorder %s18, 0
      %p149 = por %p147, %p148
      %p150 = scmp.ne.s32.totalorder %s142, %s144
      %p151 = scmp.eq.s32.totalorder %s23, 1
      %p152 = por %p150, %p151
      %p153 = scmp.ne.s32.totalorder %s144, %s145
      %p154 = scmp.eq.s32.totalorder %s23, 0
      %p155 = por %p153, %p154
      %p156 = scmp.ne.s32.totalorder %s144, %s145
      %p157 = scmp.eq.s32.totalorder %s24, 1
      %p158 = por %p156, %p157
      %p160 = scmp.ne.s32.totalorder %s145, %s159
      %p161 = scmp.eq.s32.totalorder %s24, 0
      %p162 = por %p160, %p161
      %s163 = ssub.s32 %s25, %s37
      %p164 = scmp.eq.s32.totalorder %s163, 0
      %s166 = sadd.s32 %s165, 1
      %s167 = scalar_select %p164, %s165, %s166
      %p170 = pneg %p164
      %p171 = scmp.eq.s32.totalorder %s18, 1
      %p172 = por %p170, %p171
      %p173 = scmp.ne.s32.totalorder %s165, %s168
      %p174 = scmp.eq.s32.totalorder %s18, 0
      %p175 = por %p173, %p174
      %p176 = scmp.ne.s32.totalorder %s165, %s168
      %p177 = scmp.eq.s32.totalorder %s23, 1
      %p178 = por %p176, %p177
      %p179 = scmp.ne.s32.totalorder %s168, %s169
      %p180 = scmp.eq.s32.totalorder %s23, 0
      %p181 = por %p179, %p180
      %p182 = scmp.ne.s32.totalorder %s168, %s169
      %p183 = scmp.eq.s32.totalorder %s24, 1
      %p184 = por %p182, %p183
      %p186 = scmp.ne.s32.totalorder %s169, %s185
      %p187 = scmp.eq.s32.totalorder %s24, 0
      %p188 = por %p186, %p187
      %p189 = scmp.le.s32.totalorder 1, %s18
      %p190 = scmp.lt.s32.totalorder %s18, 3
      %p191 = pnand %p189, %p190
      %p192 = pneg %p191
      // Predicated region
      $region9: #{mlp_forward.1} parent=5 // pred_check
        _
      $region10: #{mlp_forward.1} parent=5 // pred_check_branch
        %194 = sbr.rel (%p191) target = $region12
      $region11: #{mlp_forward.1} parent=5 // pred_region
        %s195 = ssub.s32 %s18, 1
        // Predicated region
        $region13: #{mlp_forward.1} parent=11 // pred_check
          %p196 = pneg %p82
        $region14: #{mlp_forward.1} parent=11 // pred_check_branch
          %198 = sbr.rel (%p196) target = $region16
        $region15: #{mlp_forward.1} parent=11 // pred_region
          %s199 = smul.u32 2, %s28
          %201 = vsyncadd [#allocation7], 0
          %s202 = smul.addr %s199, 8
          %s203 = scalar_lea.hbm %s1, %s202
          %s204 = sshll.u32 %s203, 4
          %s205 = int_to_ptr.hbm [resolvable:$true] %s204
          %s206 = sshll.u32 [#allocation6], 4
          %s207 = int_to_ptr.vmem [resolvable:$true] %s206
          %212 = dma.hbm_to_vmem [thread:$0]  %s205, 4096, %s207, [#allocation7], 256, 256, 16
        $region16: #{mlp_forward.1} parent=11 // pred_fallthru
          _
        // Predicated region
        $region17: #{mlp_forward.1} parent=11 // pred_check
          %p213 = pneg %p108
        $region18: #{mlp_forward.1} parent=11 // pred_check_branch
          %215 = sbr.rel (%p213) target = $region20
        $region19: #{mlp_forward.1} parent=11 // pred_region
          %s216 = smul.u32 2, %s28
          %p217 = scmp.lt.s32.totalorder %s216, 1
          %s218 = scalar_select %p217, %s216, 1
          %s219 = scalar_lea.vmem %s2, %s218
          %s220 = smul.u32 2, %s28
        $region20: #{mlp_forward.1} parent=11 // pred_fallthru
          _
        // Predicated region
        $region21: #{mlp_forward.1} parent=11 // pred_check
          %p221 = pneg %p134
        $region22: #{mlp_forward.1} parent=11 // pred_check_branch
          %223 = sbr.rel (%p221) target = $region24
        $region23: #{mlp_forward.1} parent=11 // pred_region
          %s224 = smul.u32 32, %s28
          %226 = vsyncadd [#allocation7], 0
          %s227 = smul.addr %s224, 8
          %s228 = scalar_lea.hbm %s3, %s227
          %s229 = sshll.u32 %s228, 4
          %s230 = int_to_ptr.hbm [resolvable:$true] %s229
          %s231 = sshll.u32 [#allocation8], 4
          %s232 = int_to_ptr.vmem [resolvable:$true] %s231
          %237 = dma.hbm_to_vmem [thread:$0]  %s230, 4096, %s232, [#allocation7], 128, 128, 8
        $region24: #{mlp_forward.1} parent=11 // pred_fallthru
          _
        // Predicated region
        $region25: #{mlp_forward.1} parent=11 // pred_check
          %p238 = pneg %p155
        $region26: #{mlp_forward.1} parent=11 // pred_check_branch
          %240 = sbr.rel (%p238) target = $region28
        $region27: #{mlp_forward.1} parent=11 // pred_region
          _
        $region28: #{mlp_forward.1} parent=11 // pred_fallthru
          _
      $region12: #{mlp_forward.1} parent=5 // pred_fallthru
        _
      %p241 = scmp.lt.s32.totalorder %s18, 2
      // Predicated region
      $region29: #{mlp_forward.1} parent=5 // pred_check
        %p242 = pneg %p241
      $region30: #{mlp_forward.1} parent=5 // pred_check_branch
        %244 = sbr.rel (%p242) target = $region32
      $region31: #{mlp_forward.1} parent=5 // pred_region
        // Predicated region
        $region33: #{mlp_forward.1} parent=31 // pred_check
          %p245 = pneg %p50
        $region34: #{mlp_forward.1} parent=31 // pred_check_branch
          %247 = sbr.rel (%p245) target = $region36
        $region35: #{mlp_forward.1} parent=31 // pred_region
          %s248 = sand.u32 %s40, 1
          %s249 = scalar_lea.sflag [#allocation4], %s248
          %s250 = sand.u32 %s40, 1
          %s251 = smul.addr %s250, 64
          %s252 = scalar_lea.vmem [#allocation3], %s251
          %s253 = smul.u32 8, %s25
          %255 = vsyncadd %s249, 0
          %s256 = smul.addr %s253, 8
          %s257 = scalar_lea.hbm %s0, %s256
          %s258 = sshll.u32 %s257, 4
          %s259 = int_to_ptr.hbm [resolvable:$true] %s258
          %s260 = sshll.u32 %s252, 4
          %s261 = int_to_ptr.vmem [resolvable:$true] %s260
          %266 = dma.hbm_to_vmem [thread:$0]  %s259, 1024, %s261, %s249, 128, 128, 8
        $region36: #{mlp_forward.1} parent=31 // pred_fallthru
          _
      $region32: #{mlp_forward.1} parent=5 // pred_fallthru
        _
      %p267 = scmp.le.s32.totalorder 1, %s18
      %p268 = scmp.lt.s32.totalorder %s18, 3
      %p269 = pnand %p267, %p268
      %p270 = pneg %p269
      // Predicated region
      $region37: #{mlp_forward.1} parent=5 // pred_check
        _
      $region38: #{mlp_forward.1} parent=5 // pred_check_branch
        %272 = sbr.rel (%p269) target = $region40
      $region39: #{mlp_forward.1} parent=5 // pred_region
        %s273 = ssub.s32 %s18, 1
        %s274 = sand.u32 %s43, 1
        %s275 = scalar_lea.sflag [#allocation4], %s274
        %s276 = sand.u32 %s43, 1
        %s277 = smul.addr %s276, 64
        %s278 = scalar_lea.vmem [#allocation3], %s277
        // Predicated region
        $region41: #{mlp_forward.1} parent=39 // pred_check
          %p279 = pneg %p56
        $region42: #{mlp_forward.1} parent=39 // pred_check_branch
          %281 = sbr.rel (%p279) target = $region44
        $region43: #{mlp_forward.1} parent=39 // pred_region
          %283 = dma.done %s275, 1024
        $region44: #{mlp_forward.1} parent=39 // pred_fallthru
          _
        // Predicated region
        $region45: #{mlp_forward.1} parent=39 // pred_check
          %p284 = pneg %p82
        $region46: #{mlp_forward.1} parent=39 // pred_check_branch
          %286 = sbr.rel (%p284) target = $region48
        $region47: #{mlp_forward.1} parent=39 // pred_region
          %288 = dma.done [#allocation7], 4096
        $region48: #{mlp_forward.1} parent=39 // pred_fallthru
          _
        // Predicated region
        $region49: #{mlp_forward.1} parent=39 // pred_check
          %p289 = pneg %p134
        $region50: #{mlp_forward.1} parent=39 // pred_check_branch
          %291 = sbr.rel (%p289) target = $region52
        $region51: #{mlp_forward.1} parent=39 // pred_region
          %293 = dma.done [#allocation7], 4096
        $region52: #{mlp_forward.1} parent=39 // pred_fallthru
          _
        %s294 = sand.u32 %s43, 1
        %s295 = scalar_lea.sflag [#allocation4], %s294
        %s296 = sand.u32 %s43, 1
        %s297 = smul.addr %s296, 64
        %s298 = scalar_lea.vmem [#allocation3], %s297
        %p299 = pneg %p56
        %p300 = pneg %p53
        %p301 = pneg %p82
        %p302 = pneg %p79
        %s303 = smul.u32 2, %s28
        %p304 = scmp.lt.s32.totalorder %s303, 1
        %s305 = scalar_select %p304, %s303, 1
        %s306 = scalar_lea.vmem %s2, %s305
        %p307 = pneg %p108
        %p308 = pneg %p105
        %p309 = pneg %p134
        %p310 = pneg %p131
        %p311 = pneg %p155
        %p312 = pneg %p152
        %p313 = pneg %p181
        %p314 = pneg %p178
        %s315 = sand.u32 %s168, 1
        %s316 = scalar_lea.sflag [#allocation5], %s315
        %s317 = sand.u32 %s168, 1
        %s318 = smul.addr %s317, 64
        %s319 = scalar_lea.vmem [#allocation9], %s318
        %s320 = smul.u32 8, %s27
        %s321 = smul.u32 2, %s28
        %s322 = smul.u32 2, %s28
        %p323 = scmp.lt.s32.totalorder %s322, 1
        %s324 = scalar_select %p323, %s322, 1
        %s325 = scalar_lea.vmem %s2, %s324
        %s326 = smul.u32 2, %s28
        %s327 = smul.u32 32, %s28
        %s328 = smul.u32 8, %s27
        %p329 = scmp.eq.s32.totalorder %s28, 0
        // Predicated region
        $region53: #{mlp_forward.1} parent=39 // pred_check
          %p330 = pneg %p329
        $region54: #{mlp_forward.1} parent=39 // pred_check_branch
          %332 = sbr.rel (%p330) target = $region56
        $region55: #{mlp_forward.1} parent=39 // pred_region
          %333 = vst [vmem:[#allocation2] sm:$0xff] 0.0
          %334 = vst [vmem:[#allocation2 + $0x8] sm:$0xff] 0.0
          %335 = vst [vmem:[#allocation2 + $0x10] sm:$0xff] 0.0
          %336 = vst [vmem:[#allocation2 + $0x18] sm:$0xff] 0.0
          %337 = vst [vmem:[#allocation2 + $0x20] sm:$0xff] 0.0
          %338 = vst [vmem:[#allocation2 + $0x28] sm:$0xff] 0.0
          %339 = vst [vmem:[#allocation2 + $0x30] sm:$0xff] 0.0
          %340 = vst [vmem:[#allocation2 + $0x38] sm:$0xff] 0.0
        $region56: #{mlp_forward.1} parent=39 // pred_fallthru
          _
        %v341 = vld [vmem:[%s278] sm:$0xff]
        %v342 = vld [vmem:[%s278 + $0x8] sm:$0xff]
        %v343 = vld [vmem:[%s278 + $0x10] sm:$0xff]
        %v344 = vld [vmem:[%s278 + $0x18] sm:$0xff]
        %v345 = vld [vmem:[%s278 + $0x20] sm:$0xff]
        %v346 = vld [vmem:[%s278 + $0x28] sm:$0xff]
        %v347 = vld [vmem:[%s278 + $0x30] sm:$0xff]
        %v348 = vld [vmem:[%s278 + $0x38] sm:$0xff]
        %v349 = vld [vmem:[#allocation6] sm:$0xff]
        %v350 = vld [vmem:[#allocation6 + $0x8] sm:$0xff]
        %v351 = vld [vmem:[#allocation6 + $0x10] sm:$0xff]
        %v352 = vld [vmem:[#allocation6 + $0x18] sm:$0xff]
        %v353 = vld [vmem:[#allocation6 + $0x20] sm:$0xff]
        %v354 = vld [vmem:[#allocation6 + $0x28] sm:$0xff]
        %v355 = vld [vmem:[#allocation6 + $0x30] sm:$0xff]
        %v356 = vld [vmem:[#allocation6 + $0x38] sm:$0xff]
        %v357 = vld [vmem:[#allocation6 + $0x40] sm:$0xff]
        %v358 = vld [vmem:[#allocation6 + $0x48] sm:$0xff]
        %v359 = vld [vmem:[#allocation6 + $0x50] sm:$0xff]
        %v360 = vld [vmem:[#allocation6 + $0x58] sm:$0xff]
        %v361 = vld [vmem:[#allocation6 + $0x60] sm:$0xff]
        %v362 = vld [vmem:[#allocation6 + $0x68] sm:$0xff]
        %v363 = vld [vmem:[#allocation6 + $0x70] sm:$0xff]
        %v364 = vld [vmem:[#allocation6 + $0x78] sm:$0xff]
        %v365 = vld [vmem:[#allocation6 + $0x80] sm:$0xff]
        %v366 = vld [vmem:[#allocation6 + $0x88] sm:$0xff]
        %v367 = vld [vmem:[#allocation6 + $0x90] sm:$0xff]
        %v368 = vld [vmem:[#allocation6 + $0x98] sm:$0xff]
        %v369 = vld [vmem:[#allocation6 + $0xa0] sm:$0xff]
        %v370 = vld [vmem:[#allocation6 + $0xa8] sm:$0xff]
        %v371 = vld [vmem:[#allocation6 + $0xb0] sm:$0xff]
        %v372 = vld [vmem:[#allocation6 + $0xb8] sm:$0xff]
        %v373 = vld [vmem:[#allocation6 + $0xc0] sm:$0xff]
        %v374 = vld [vmem:[#allocation6 + $0xc8] sm:$0xff]
        %v375 = vld [vmem:[#allocation6 + $0xd0] sm:$0xff]
        %v376 = vld [vmem:[#allocation6 + $0xd8] sm:$0xff]
        %v377 = vld [vmem:[#allocation6 + $0xe0] sm:$0xff]
        %v378 = vld [vmem:[#allocation6 + $0xe8] sm:$0xff]
        %v379 = vld [vmem:[#allocation6 + $0xf0] sm:$0xff]
        %v380 = vld [vmem:[#allocation6 + $0xf8] sm:$0xff]
        %v381 = vld [vmem:[%s325] sm:$0x3]
        %v383 = vperm.slane %v381, 0
        %v384 = vperm.slane %v381, 1
        %387 = vmatpush.msra.mxu0 %v379
        %388 = vmatpush.msra.mxu0 %v377
        %389 = vmatpush.msra.mxu0 %v375
        %390 = vmatpush.msra.mxu0 %v373
        %391 = vmatpush.msra.mxu0 %v371
        %392 = vmatpush.msra.mxu0 %v369
        %393 = vmatpush.msra.mxu0 %v367
        %394 = vmatpush.msra.mxu0 %v365
        %395 = vmatpush.msra.mxu0 %v363
        %396 = vmatpush.msra.mxu0 %v361
        %397 = vmatpush.msra.mxu0 %v359
        %398 = vmatpush.msra.mxu0 %v357
        %399 = vmatpush.msra.mxu0 %v355
        %400 = vmatpush.msra.mxu0 %v353
        %401 = vmatpush.msra.mxu0 %v351
        %402 = vmatpush.msra.mxu0 %v349
        %403 = vmatmul.f32.gmra.mxu0 %v341
        %v404 = vpop.f32.mrf.mxu0
        %v405 = vadd.f32 %v383, %v404
        %406 = vmatmul.f32.gmra.mxu0 %v342
        %v407 = vpop.f32.mrf.mxu0
        %v408 = vadd.f32 %v383, %v407
        %409 = vmatmul.f32.gmra.mxu0 %v343
        %v410 = vpop.f32.mrf.mxu0
        %v411 = vadd.f32 %v383, %v410
        %412 = vmatmul.f32.gmra.mxu0 %v344
        %v413 = vpop.f32.mrf.mxu0
        %v414 = vadd.f32 %v383, %v413
        %415 = vmatmul.f32.gmra.mxu0 %v345
        %v416 = vpop.f32.mrf.mxu0
        %v417 = vadd.f32 %v383, %v416
        %418 = vmatmul.f32.gmra.mxu0 %v346
        %v419 = vpop.f32.mrf.mxu0
        %v420 = vadd.f32 %v383, %v419
        %421 = vmatmul.f32.gmra.mxu0 %v347
        %v422 = vpop.f32.mrf.mxu0
        %v423 = vadd.f32 %v383, %v422
        %424 = vmatmul.f32.gmra.mxu0 %v348
        %v425 = vpop.f32.mrf.mxu0
        %v426 = vadd.f32 %v383, %v425
        %427 = vdwg.mxu0
        %428 = vmatpush.msra.mxu0 %v380
        %429 = vmatpush.msra.mxu0 %v378
        %430 = vmatpush.msra.mxu0 %v376
        %431 = vmatpush.msra.mxu0 %v374
        %432 = vmatpush.msra.mxu0 %v372
        %433 = vmatpush.msra.mxu0 %v370
        %434 = vmatpush.msra.mxu0 %v368
        %435 = vmatpush.msra.mxu0 %v366
        %436 = vmatpush.msra.mxu0 %v364
        %437 = vmatpush.msra.mxu0 %v362
        %438 = vmatpush.msra.mxu0 %v360
        %439 = vmatpush.msra.mxu0 %v358
        %440 = vmatpush.msra.mxu0 %v356
        %441 = vmatpush.msra.mxu0 %v354
        %442 = vmatpush.msra.mxu0 %v352
        %443 = vmatpush.msra.mxu0 %v350
        %444 = vmatmul.f32.gmra.mxu0 %v341
        %v445 = vpop.f32.mrf.mxu0
        %v446 = vadd.f32 %v384, %v445
        %447 = vmatmul.f32.gmra.mxu0 %v342
        %v448 = vpop.f32.mrf.mxu0
        %v449 = vadd.f32 %v384, %v448
        %450 = vmatmul.f32.gmra.mxu0 %v343
        %v451 = vpop.f32.mrf.mxu0
        %v452 = vadd.f32 %v384, %v451
        %453 = vmatmul.f32.gmra.mxu0 %v344
        %v454 = vpop.f32.mrf.mxu0
        %v455 = vadd.f32 %v384, %v454
        %456 = vmatmul.f32.gmra.mxu0 %v345
        %v457 = vpop.f32.mrf.mxu0
        %v458 = vadd.f32 %v384, %v457
        %459 = vmatmul.f32.gmra.mxu0 %v346
        %v460 = vpop.f32.mrf.mxu0
        %v461 = vadd.f32 %v384, %v460
        %462 = vmatmul.f32.gmra.mxu0 %v347
        %v463 = vpop.f32.mrf.mxu0
        %v464 = vadd.f32 %v384, %v463
        %465 = vmatmul.f32.gmra.mxu0 %v348
        %v466 = vpop.f32.mrf.mxu0
        %v467 = vadd.f32 %v384, %v466
        %468 = vdwg.mxu0
        %v469 = vmul.f32 %v405, 0.5
        %v470 = vmul.f32 %v446, 0.5
        %v471 = vmul.f32 %v408, 0.5
        %v472 = vmul.f32 %v449, 0.5
        %v473 = vmul.f32 %v411, 0.5
        %v474 = vmul.f32 %v452, 0.5
        %v475 = vmul.f32 %v414, 0.5
        %v476 = vmul.f32 %v455, 0.5
        %v477 = vmul.f32 %v417, 0.5
        %v478 = vmul.f32 %v458, 0.5
        %v479 = vmul.f32 %v420, 0.5
        %v480 = vmul.f32 %v461, 0.5
        %v481 = vmul.f32 %v423, 0.5
        %v482 = vmul.f32 %v464, 0.5
        %v483 = vmul.f32 %v426, 0.5
        %v484 = vmul.f32 %v467, 0.5
        %v485 = vmul.f32 %v405, 0.70710677
        %v486 = vmul.f32 %v446, 0.70710677
        %v487 = vmul.f32 %v408, 0.70710677
        %v488 = vmul.f32 %v449, 0.70710677
        %v489 = vmul.f32 %v411, 0.70710677
        %v490 = vmul.f32 %v452, 0.70710677
        %v491 = vmul.f32 %v414, 0.70710677
        %v492 = vmul.f32 %v455, 0.70710677
        %v493 = vmul.f32 %v417, 0.70710677
        %v494 = vmul.f32 %v458, 0.70710677
        %v495 = vmul.f32 %v420, 0.70710677
        %v496 = vmul.f32 %v461, 0.70710677
        %v497 = vmul.f32 %v423, 0.70710677
        %v498 = vmul.f32 %v464, 0.70710677
        %v499 = vmul.f32 %v426, 0.70710677
        %v500 = vmul.f32 %v467, 0.70710677
        %v501 = vand.u32 2147483647, %v485
        %v502 = vand.u32 2147483647, %v486
        %v503 = vand.u32 2147483647, %v487
        %v504 = vand.u32 2147483647, %v488
        %v505 = vand.u32 2147483647, %v489
        %v506 = vand.u32 2147483647, %v490
        %v507 = vand.u32 2147483647, %v491
        %v508 = vand.u32 2147483647, %v492
        %v509 = vand.u32 2147483647, %v493
        %v510 = vand.u32 2147483647, %v494
        %v511 = vand.u32 2147483647, %v495
        %v512 = vand.u32 2147483647, %v496
        %v513 = vand.u32 2147483647, %v497
        %v514 = vand.u32 2147483647, %v498
        %v515 = vand.u32 2147483647, %v499
        %v516 = vand.u32 2147483647, %v500
        %v517 = vmul.f32 %v501, 0.3275911
        %v518 = vmul.f32 %v502, 0.3275911
        %v519 = vmul.f32 %v503, 0.3275911
        %v520 = vmul.f32 %v504, 0.3275911
        %v521 = vmul.f32 %v505, 0.3275911
        %v522 = vmul.f32 %v506, 0.3275911
        %v523 = vmul.f32 %v507, 0.3275911
        %v524 = vmul.f32 %v508, 0.3275911
        %v525 = vmul.f32 %v509, 0.3275911
        %v526 = vmul.f32 %v510, 0.3275911
        %v527 = vmul.f32 %v511, 0.3275911
        %v528 = vmul.f32 %v512, 0.3275911
        %v529 = vmul.f32 %v513, 0.3275911
        %v530 = vmul.f32 %v514, 0.3275911
        %v531 = vmul.f32 %v515, 0.3275911
        %v532 = vmul.f32 %v516, 0.3275911
        %v533 = vadd.f32 %v517, 1.0
        %v534 = vadd.f32 %v518, 1.0
        %v535 = vadd.f32 %v519, 1.0
        %v536 = vadd.f32 %v520, 1.0
        %v537 = vadd.f32 %v521, 1.0
        %v538 = vadd.f32 %v522, 1.0
        %v539 = vadd.f32 %v523, 1.0
        %v540 = vadd.f32 %v524, 1.0
        %v541 = vadd.f32 %v525, 1.0
        %v542 = vadd.f32 %v526, 1.0
        %v543 = vadd.f32 %v527, 1.0
        %v544 = vadd.f32 %v528, 1.0
        %v545 = vadd.f32 %v529, 1.0
        %v546 = vadd.f32 %v530, 1.0
        %v547 = vadd.f32 %v531, 1.0
        %v548 = vadd.f32 %v532, 1.0
        %v549 = vrcp.pop %v533
        %v550 = vmul.f32 %v533, %v549
        %v551 = vsub.f32 1.0, %v550
        %v552 = vmul.f32 %v549, %v551
        %v553 = vadd.f32 %v549, %v552
        %vm554 = vweird.f32 %v533
        %vm555 = vweird.f32 %v549
        %vm556 = vmor %vm554, %vm555
        %v557 = vsel %vm556, %v549, %v553
        %v558 = vand.u32 2147483647, %v533
        %vm559 = vcmp.eq.f32.partialorder %v558, 8.507059e+37
        %v560 = vand.u32 %v533, 2147483648
        %v561 = vor.u32 1.1754944e-38, %v560
        %v562 = vsel %vm559, %v561, %v557
        %v563 = vmul.f32 1.0, %v562
        %v564 = vrcp.pop %v534
        %v565 = vmul.f32 %v534, %v564
        %v566 = vsub.f32 1.0, %v565
        %v567 = vmul.f32 %v564, %v566
        %v568 = vadd.f32 %v564, %v567
        %vm569 = vweird.f32 %v534
        %vm570 = vweird.f32 %v564
        %vm571 = vmor %vm569, %vm570
        %v572 = vsel %vm571, %v564, %v568
        %v573 = vand.u32 2147483647, %v534
        %vm574 = vcmp.eq.f32.partialorder %v573, 8.507059e+37
        %v575 = vand.u32 %v534, 2147483648
        %v576 = vor.u32 1.1754944e-38, %v575
        %v577 = vsel %vm574, %v576, %v572
        %v578 = vmul.f32 1.0, %v577
        %v579 = vrcp.pop %v535
        %v580 = vmul.f32 %v535, %v579
        %v581 = vsub.f32 1.0, %v580
        %v582 = vmul.f32 %v579, %v581
        %v583 = vadd.f32 %v579, %v582
        %vm584 = vweird.f32 %v535
        %vm585 = vweird.f32 %v579
        %vm586 = vmor %vm584, %vm585
        %v587 = vsel %vm586, %v579, %v583
        %v588 = vand.u32 2147483647, %v535
        %vm589 = vcmp.eq.f32.partialorder %v588, 8.507059e+37
        %v590 = vand.u32 %v535, 2147483648
        %v591 = vor.u32 1.1754944e-38, %v590
        %v592 = vsel %vm589, %v591, %v587
        %v593 = vmul.f32 1.0, %v592
        %v594 = vrcp.pop %v536
        %v595 = vmul.f32 %v536, %v594
        %v596 = vsub.f32 1.0, %v595
        %v597 = vmul.f32 %v594, %v596
        %v598 = vadd.f32 %v594, %v597
        %vm599 = vweird.f32 %v536
        %vm600 = vweird.f32 %v594
        %vm601 = vmor %vm599, %vm600
        %v602 = vsel %vm601, %v594, %v598
        %v603 = vand.u32 2147483647, %v536
        %vm604 = vcmp.eq.f32.partialorder %v603, 8.507059e+37
        %v605 = vand.u32 %v536, 2147483648
        %v606 = vor.u32 1.1754944e-38, %v605
        %v607 = vsel %vm604, %v606, %v602
        %v608 = vmul.f32 1.0, %v607
        %v609 = vrcp.pop %v537
        %v610 = vmul.f32 %v537, %v609
        %v611 = vsub.f32 1.0, %v610
        %v612 = vmul.f32 %v609, %v611
        %v613 = vadd.f32 %v609, %v612
        %vm614 = vweird.f32 %v537
        %vm615 = vweird.f32 %v609
        %vm616 = vmor %vm614, %vm615
        %v617 = vsel %vm616, %v609, %v613
        %v618 = vand.u32 2147483647, %v537
        %vm619 = vcmp.eq.f32.partialorder %v618, 8.507059e+37
        %v620 = vand.u32 %v537, 2147483648
        %v621 = vor.u32 1.1754944e-38, %v620
        %v622 = vsel %vm619, %v621, %v617
        %v623 = vmul.f32 1.0, %v622
        %v624 = vrcp.pop %v538
        %v625 = vmul.f32 %v538, %v624
        %v626 = vsub.f32 1.0, %v625
        %v627 = vmul.f32 %v624, %v626
        %v628 = vadd.f32 %v624, %v627
        %vm629 = vweird.f32 %v538
        %vm630 = vweird.f32 %v624
        %vm631 = vmor %vm629, %vm630
        %v632 = vsel %vm631, %v624, %v628
        %v633 = vand.u32 2147483647, %v538
        %vm634 = vcmp.eq.f32.partialorder %v633, 8.507059e+37
        %v635 = vand.u32 %v538, 2147483648
        %v636 = vor.u32 1.1754944e-38, %v635
        %v637 = vsel %vm634, %v636, %v632
        %v638 = vmul.f32 1.0, %v637
        %v639 = vrcp.pop %v539
        %v640 = vmul.f32 %v539, %v639
        %v641 = vsub.f32 1.0, %v640
        %v642 = vmul.f32 %v639, %v641
        %v643 = vadd.f32 %v639, %v642
        %vm644 = vweird.f32 %v539
        %vm645 = vweird.f32 %v639
        %vm646 = vmor %vm644, %vm645
        %v647 = vsel %vm646, %v639, %v643
        %v648 = vand.u32 2147483647, %v539
        %vm649 = vcmp.eq.f32.partialorder %v648, 8.507059e+37
        %v650 = vand.u32 %v539, 2147483648
        %v651 = vor.u32 1.1754944e-38, %v650
        %v652 = vsel %vm649, %v651, %v647
        %v653 = vmul.f32 1.0, %v652
        %v654 = vrcp.pop %v540
        %v655 = vmul.f32 %v540, %v654
        %v656 = vsub.f32 1.0, %v655
        %v657 = vmul.f32 %v654, %v656
        %v658 = vadd.f32 %v654, %v657
        %vm659 = vweird.f32 %v540
        %vm660 = vweird.f32 %v654
        %vm661 = vmor %vm659, %vm660
        %v662 = vsel %vm661, %v654, %v658
        %v663 = vand.u32 2147483647, %v540
        %vm664 = vcmp.eq.f32.partialorder %v663, 8.507059e+37
        %v665 = vand.u32 %v540, 2147483648
        %v666 = vor.u32 1.1754944e-38, %v665
        %v667 = vsel %vm664, %v666, %v662
        %v668 = vmul.f32 1.0, %v667
        %v669 = vrcp.pop %v541
        %v670 = vmul.f32 %v541, %v669
        %v671 = vsub.f32 1.0, %v670
        %v672 = vmul.f32 %v669, %v671
        %v673 = vadd.f32 %v669, %v672
        %vm674 = vweird.f32 %v541
        %vm675 = vweird.f32 %v669
        %vm676 = vmor %vm674, %vm675
        %v677 = vsel %vm676, %v669, %v673
        %v678 = vand.u32 2147483647, %v541
        %vm679 = vcmp.eq.f32.partialorder %v678, 8.507059e+37
        %v680 = vand.u32 %v541, 2147483648
        %v681 = vor.u32 1.1754944e-38, %v680
        %v682 = vsel %vm679, %v681, %v677
        %v683 = vmul.f32 1.0, %v682
        %v684 = vrcp.pop %v542
        %v685 = vmul.f32 %v542, %v684
        %v686 = vsub.f32 1.0, %v685
        %v687 = vmul.f32 %v684, %v686
        %v688 = vadd.f32 %v684, %v687
        %vm689 = vweird.f32 %v542
        %vm690 = vweird.f32 %v684
        %vm691 = vmor %vm689, %vm690
        %v692 = vsel %vm691, %v684, %v688
        %v693 = vand.u32 2147483647, %v542
        %vm694 = vcmp.eq.f32.partialorder %v693, 8.507059e+37
        %v695 = vand.u32 %v542, 2147483648
        %v696 = vor.u32 1.1754944e-38, %v695
        %v697 = vsel %vm694, %v696, %v692
        %v698 = vmul.f32 1.0, %v697
        %v699 = vrcp.pop %v543
        %v700 = vmul.f32 %v543, %v699
        %v701 = vsub.f32 1.0, %v700
        %v702 = vmul.f32 %v699, %v701
        %v703 = vadd.f32 %v699, %v702
        %vm704 = vweird.f32 %v543
        %vm705 = vweird.f32 %v699
        %vm706 = vmor %vm704, %vm705
        %v707 = vsel %vm706, %v699, %v703
        %v708 = vand.u32 2147483647, %v543
        %vm709 = vcmp.eq.f32.partialorder %v708, 8.507059e+37
        %v710 = vand.u32 %v543, 2147483648
        %v711 = vor.u32 1.1754944e-38, %v710
        %v712 = vsel %vm709, %v711, %v707
        %v713 = vmul.f32 1.0, %v712
        %v714 = vrcp.pop %v544
        %v715 = vmul.f32 %v544, %v714
        %v716 = vsub.f32 1.0, %v715
        %v717 = vmul.f32 %v714, %v716
        %v718 = vadd.f32 %v714, %v717
        %vm719 = vweird.f32 %v544
        %vm720 = vweird.f32 %v714
        %vm721 = vmor %vm719, %vm720
        %v722 = vsel %vm721, %v714, %v718
        %v723 = vand.u32 2147483647, %v544
        %vm724 = vcmp.eq.f32.partialorder %v723, 8.507059e+37
        %v725 = vand.u32 %v544, 2147483648
        %v726 = vor.u32 1.1754944e-38, %v725
        %v727 = vsel %vm724, %v726, %v722
        %v728 = vmul.f32 1.0, %v727
        %v729 = vrcp.pop %v545
        %v730 = vmul.f32 %v545, %v729
        %v731 = vsub.f32 1.0, %v730
        %v732 = vmul.f32 %v729, %v731
        %v733 = vadd.f32 %v729, %v732
        %vm734 = vweird.f32 %v545
        %vm735 = vweird.f32 %v729
        %vm736 = vmor %vm734, %vm735
        %v737 = vsel %vm736, %v729, %v733
        %v738 = vand.u32 2147483647, %v545
        %vm739 = vcmp.eq.f32.partialorder %v738, 8.507059e+37
        %v740 = vand.u32 %v545, 2147483648
        %v741 = vor.u32 1.1754944e-38, %v740
        %v742 = vsel %vm739, %v741, %v737
        %v743 = vmul.f32 1.0, %v742
        %v744 = vrcp.pop %v546
        %v745 = vmul.f32 %v546, %v744
        %v746 = vsub.f32 1.0, %v745
        %v747 = vmul.f32 %v744, %v746
        %v748 = vadd.f32 %v744, %v747
        %vm749 = vweird.f32 %v546
        %vm750 = vweird.f32 %v744
        %vm751 = vmor %vm749, %vm750
        %v752 = vsel %vm751, %v744, %v748
        %v753 = vand.u32 2147483647, %v546
        %vm754 = vcmp.eq.f32.partialorder %v753, 8.507059e+37
        %v755 = vand.u32 %v546, 2147483648
        %v756 = vor.u32 1.1754944e-38, %v755
        %v757 = vsel %vm754, %v756, %v752
        %v758 = vmul.f32 1.0, %v757
        %v759 = vrcp.pop %v547
        %v760 = vmul.f32 %v547, %v759
        %v761 = vsub.f32 1.0, %v760
        %v762 = vmul.f32 %v759, %v761
        %v763 = vadd.f32 %v759, %v762
        %vm764 = vweird.f32 %v547
        %vm765 = vweird.f32 %v759
        %vm766 = vmor %vm764, %vm765
        %v767 = vsel %vm766, %v759, %v763
        %v768 = vand.u32 2147483647, %v547
        %vm769 = vcmp.eq.f32.partialorder %v768, 8.507059e+37
        %v770 = vand.u32 %v547, 2147483648
        %v771 = vor.u32 1.1754944e-38, %v770
        %v772 = vsel %vm769, %v771, %v767
        %v773 = vmul.f32 1.0, %v772
        %v774 = vrcp.pop %v548
        %v775 = vmul.f32 %v548, %v774
        %v776 = vsub.f32 1.0, %v775
        %v777 = vmul.f32 %v774, %v776
        %v778 = vadd.f32 %v774, %v777
        %vm779 = vweird.f32 %v548
        %vm780 = vweird.f32 %v774
        %vm781 = vmor %vm779, %vm780
        %v782 = vsel %vm781, %v774, %v778
        %v783 = vand.u32 2147483647, %v548
        %vm784 = vcmp.eq.f32.partialorder %v783, 8.507059e+37
        %v785 = vand.u32 %v548, 2147483648
        %v786 = vor.u32 1.1754944e-38, %v785
        %v787 = vsel %vm784, %v786, %v782
        %v788 = vmul.f32 1.0, %v787
        %v789 = vmul.f32 %v563, 1.0614054
        %v790 = vmul.f32 %v578, 1.0614054
        %v791 = vmul.f32 %v593, 1.0614054
        %v792 = vmul.f32 %v608, 1.0614054
        %v793 = vmul.f32 %v623, 1.0614054
        %v794 = vmul.f32 %v638, 1.0614054
        %v795 = vmul.f32 %v653, 1.0614054
        %v796 = vmul.f32 %v668, 1.0614054
        %v797 = vmul.f32 %v683, 1.0614054
        %v798 = vmul.f32 %v698, 1.0614054
        %v799 = vmul.f32 %v713, 1.0614054
        %v800 = vmul.f32 %v728, 1.0614054
        %v801 = vmul.f32 %v743, 1.0614054
        %v802 = vmul.f32 %v758, 1.0614054
        %v803 = vmul.f32 %v773, 1.0614054
        %v804 = vmul.f32 %v788, 1.0614054
        %v805 = vadd.f32 %v789, -1.4531521
        %v806 = vadd.f32 %v790, -1.4531521
        %v807 = vadd.f32 %v791, -1.4531521
        %v808 = vadd.f32 %v792, -1.4531521
        %v809 = vadd.f32 %v793, -1.4531521
        %v810 = vadd.f32 %v794, -1.4531521
        %v811 = vadd.f32 %v795, -1.4531521
        %v812 = vadd.f32 %v796, -1.4531521
        %v813 = vadd.f32 %v797, -1.4531521
        %v814 = vadd.f32 %v798, -1.4531521
        %v815 = vadd.f32 %v799, -1.4531521
        %v816 = vadd.f32 %v800, -1.4531521
        %v817 = vadd.f32 %v801, -1.4531521
        %v818 = vadd.f32 %v802, -1.4531521
        %v819 = vadd.f32 %v803, -1.4531521
        %v820 = vadd.f32 %v804, -1.4531521
        %v821 = vmul.f32 %v805, %v563
        %v822 = vmul.f32 %v806, %v578
        %v823 = vmul.f32 %v807, %v593
        %v824 = vmul.f32 %v808, %v608
        %v825 = vmul.f32 %v809, %v623
        %v826 = vmul.f32 %v810, %v638
        %v827 = vmul.f32 %v811, %v653
        %v828 = vmul.f32 %v812, %v668
        %v829 = vmul.f32 %v813, %v683
        %v830 = vmul.f32 %v814, %v698
        %v831 = vmul.f32 %v815, %v713
        %v832 = vmul.f32 %v816, %v728
        %v833 = vmul.f32 %v817, %v743
        %v834 = vmul.f32 %v818, %v758
        %v835 = vmul.f32 %v819, %v773
        %v836 = vmul.f32 %v820, %v788
        %v837 = vadd.f32 %v821, 1.4214138
        %v838 = vadd.f32 %v822, 1.4214138
        %v839 = vadd.f32 %v823, 1.4214138
        %v840 = vadd.f32 %v824, 1.4214138
        %v841 = vadd.f32 %v825, 1.4214138
        %v842 = vadd.f32 %v826, 1.4214138
        %v843 = vadd.f32 %v827, 1.4214138
        %v844 = vadd.f32 %v828, 1.4214138
        %v845 = vadd.f32 %v829, 1.4214138
        %v846 = vadd.f32 %v830, 1.4214138
        %v847 = vadd.f32 %v831, 1.4214138
        %v848 = vadd.f32 %v832, 1.4214138
        %v849 = vadd.f32 %v833, 1.4214138
        %v850 = vadd.f32 %v834, 1.4214138
        %v851 = vadd.f32 %v835, 1.4214138
        %v852 = vadd.f32 %v836, 1.4214138
        %v853 = vmul.f32 %v837, %v563
        %v854 = vmul.f32 %v838, %v578
        %v855 = vmul.f32 %v839, %v593
        %v856 = vmul.f32 %v840, %v608
        %v857 = vmul.f32 %v841, %v623
        %v858 = vmul.f32 %v842, %v638
        %v859 = vmul.f32 %v843, %v653
        %v860 = vmul.f32 %v844, %v668
        %v861 = vmul.f32 %v845, %v683
        %v862 = vmul.f32 %v846, %v698
        %v863 = vmul.f32 %v847, %v713
        %v864 = vmul.f32 %v848, %v728
        %v865 = vmul.f32 %v849, %v743
        %v866 = vmul.f32 %v850, %v758
        %v867 = vmul.f32 %v851, %v773
        %v868 = vmul.f32 %v852, %v788
        %v869 = vadd.f32 %v853, -0.28449672
        %v870 = vadd.f32 %v854, -0.28449672
        %v871 = vadd.f32 %v855, -0.28449672
        %v872 = vadd.f32 %v856, -0.28449672
        %v873 = vadd.f32 %v857, -0.28449672
        %v874 = vadd.f32 %v858, -0.28449672
        %v875 = vadd.f32 %v859, -0.28449672
        %v876 = vadd.f32 %v860, -0.28449672
        %v877 = vadd.f32 %v861, -0.28449672
        %v878 = vadd.f32 %v862, -0.28449672
        %v879 = vadd.f32 %v863, -0.28449672
        %v880 = vadd.f32 %v864, -0.28449672
        %v881 = vadd.f32 %v865, -0.28449672
        %v882 = vadd.f32 %v866, -0.28449672
        %v883 = vadd.f32 %v867, -0.28449672
        %v884 = vadd.f32 %v868, -0.28449672
        %v885 = vmul.f32 %v869, %v563
        %v886 = vmul.f32 %v870, %v578
        %v887 = vmul.f32 %v871, %v593
        %v888 = vmul.f32 %v872, %v608
        %v889 = vmul.f32 %v873, %v623
        %v890 = vmul.f32 %v874, %v638
        %v891 = vmul.f32 %v875, %v653
        %v892 = vmul.f32 %v876, %v668
        %v893 = vmul.f32 %v877, %v683
        %v894 = vmul.f32 %v878, %v698
        %v895 = vmul.f32 %v879, %v713
        %v896 = vmul.f32 %v880, %v728
        %v897 = vmul.f32 %v881, %v743
        %v898 = vmul.f32 %v882, %v758
        %v899 = vmul.f32 %v883, %v773
        %v900 = vmul.f32 %v884, %v788
        %v901 = vadd.f32 %v885, 0.2548296
        %v902 = vadd.f32 %v886, 0.2548296
        %v903 = vadd.f32 %v887, 0.2548296
        %v904 = vadd.f32 %v888, 0.2548296
        %v905 = vadd.f32 %v889, 0.2548296
        %v906 = vadd.f32 %v890, 0.2548296
        %v907 = vadd.f32 %v891, 0.2548296
        %v908 = vadd.f32 %v892, 0.2548296
        %v909 = vadd.f32 %v893, 0.2548296
        %v910 = vadd.f32 %v894, 0.2548296
        %v911 = vadd.f32 %v895, 0.2548296
        %v912 = vadd.f32 %v896, 0.2548296
        %v913 = vadd.f32 %v897, 0.2548296
        %v914 = vadd.f32 %v898, 0.2548296
        %v915 = vadd.f32 %v899, 0.2548296
        %v916 = vadd.f32 %v900, 0.2548296
        %v917 = vmul.f32 %v901, %v563
        %v918 = vmul.f32 %v902, %v578
        %v919 = vmul.f32 %v903, %v593
        %v920 = vmul.f32 %v904, %v608
        %v921 = vmul.f32 %v905, %v623
        %v922 = vmul.f32 %v906, %v638
        %v923 = vmul.f32 %v907, %v653
        %v924 = vmul.f32 %v908, %v668
        %v925 = vmul.f32 %v909, %v683
        %v926 = vmul.f32 %v910, %v698
        %v927 = vmul.f32 %v911, %v713
        %v928 = vmul.f32 %v912, %v728
        %v929 = vmul.f32 %v913, %v743
        %v930 = vmul.f32 %v914, %v758
        %v931 = vmul.f32 %v915, %v773
        %v932 = vmul.f32 %v916, %v788
        %v933 = vsub.f32 0.0, %v501
        %v934 = vsub.f32 0.0, %v502
        %v935 = vsub.f32 0.0, %v503
        %v936 = vsub.f32 0.0, %v504
        %v937 = vsub.f32 0.0, %v505
        %v938 = vsub.f32 0.0, %v506
        %v939 = vsub.f32 0.0, %v507
        %v940 = vsub.f32 0.0, %v508
        %v941 = vsub.f32 0.0, %v509
        %v942 = vsub.f32 0.0, %v510
        %v943 = vsub.f32 0.0, %v511
        %v944 = vsub.f32 0.0, %v512
        %v945 = vsub.f32 0.0, %v513
        %v946 = vsub.f32 0.0, %v514
        %v947 = vsub.f32 0.0, %v515
        %v948 = vsub.f32 0.0, %v516
        %v949 = vmul.f32 %v933, %v501
        %v950 = vmul.f32 %v934, %v502
        %v951 = vmul.f32 %v935, %v503
        %v952 = vmul.f32 %v936, %v504
        %v953 = vmul.f32 %v937, %v505
        %v954 = vmul.f32 %v938, %v506
        %v955 = vmul.f32 %v939, %v507
        %v956 = vmul.f32 %v940, %v508
        %v957 = vmul.f32 %v941, %v509
        %v958 = vmul.f32 %v942, %v510
        %v959 = vmul.f32 %v943, %v511
        %v960 = vmul.f32 %v944, %v512
        %v961 = vmul.f32 %v945, %v513
        %v962 = vmul.f32 %v946, %v514
        %v963 = vmul.f32 %v947, %v515
        %v964 = vmul.f32 %v948, %v516
        %v965 = vmul.f32 %v949, 1.442695
        %v966 = vpow.pop %v965
        %v967 = vmul.f32 %v950, 1.442695
        %v968 = vpow.pop %v967
        %v969 = vmul.f32 %v951, 1.442695
        %v970 = vpow.pop %v969
        %v971 = vmul.f32 %v952, 1.442695
        %v972 = vpow.pop %v971
        %v973 = vmul.f32 %v953, 1.442695
        %v974 = vpow.pop %v973
        %v975 = vmul.f32 %v954, 1.442695
        %v976 = vpow.pop %v975
        %v977 = vmul.f32 %v955, 1.442695
        %v978 = vpow.pop %v977
        %v979 = vmul.f32 %v956, 1.442695
        %v980 = vpow.pop %v979
        %v981 = vmul.f32 %v957, 1.442695
        %v982 = vpow.pop %v981
        %v983 = vmul.f32 %v958, 1.442695
        %v984 = vpow.pop %v983
        %v985 = vmul.f32 %v959, 1.442695
        %v986 = vpow.pop %v985
        %v987 = vmul.f32 %v960, 1.442695
        %v988 = vpow.pop %v987
        %v989 = vmul.f32 %v961, 1.442695
        %v990 = vpow.pop %v989
        %v991 = vmul.f32 %v962, 1.442695
        %v992 = vpow.pop %v991
        %v993 = vmul.f32 %v963, 1.442695
        %v994 = vpow.pop %v993
        %v995 = vmul.f32 %v964, 1.442695
        %v996 = vpow.pop %v995
        %v997 = vmul.f32 %v917, %v966
        %v998 = vmul.f32 %v918, %v968
        %v999 = vmul.f32 %v919, %v970
        %v1000 = vmul.f32 %v920, %v972
        %v1001 = vmul.f32 %v921, %v974
        %v1002 = vmul.f32 %v922, %v976
        %v1003 = vmul.f32 %v923, %v978
        %v1004 = vmul.f32 %v924, %v980
        %v1005 = vmul.f32 %v925, %v982
        %v1006 = vmul.f32 %v926, %v984
        %v1007 = vmul.f32 %v927, %v986
        %v1008 = vmul.f32 %v928, %v988
        %v1009 = vmul.f32 %v929, %v990
        %v1010 = vmul.f32 %v930, %v992
        %v1011 = vmul.f32 %v931, %v994
        %v1012 = vmul.f32 %v932, %v996
        %v1013 = vsub.f32 1.0, %v997
        %v1014 = vsub.f32 1.0, %v998
        %v1015 = vsub.f32 1.0, %v999
        %v1016 = vsub.f32 1.0, %v1000
        %v1017 = vsub.f32 1.0, %v1001
        %v1018 = vsub.f32 1.0, %v1002
        %v1019 = vsub.f32 1.0, %v1003
        %v1020 = vsub.f32 1.0, %v1004
        %v1021 = vsub.f32 1.0, %v1005
        %v1022 = vsub.f32 1.0, %v1006
        %v1023 = vsub.f32 1.0, %v1007
        %v1024 = vsub.f32 1.0, %v1008
        %v1025 = vsub.f32 1.0, %v1009
        %v1026 = vsub.f32 1.0, %v1010
        %v1027 = vsub.f32 1.0, %v1011
        %v1028 = vsub.f32 1.0, %v1012
        %vm1029 = vcmp.lt.f32.partialorder %v485, 0.0
        %vm1030 = vcmp.lt.f32.partialorder %v486, 0.0
        %vm1031 = vcmp.lt.f32.partialorder %v487, 0.0
        %vm1032 = vcmp.lt.f32.partialorder %v488, 0.0
        %vm1033 = vcmp.lt.f32.partialorder %v489, 0.0
        %vm1034 = vcmp.lt.f32.partialorder %v490, 0.0
        %vm1035 = vcmp.lt.f32.partialorder %v491, 0.0
        %vm1036 = vcmp.lt.f32.partialorder %v492, 0.0
        %vm1037 = vcmp.lt.f32.partialorder %v493, 0.0
        %vm1038 = vcmp.lt.f32.partialorder %v494, 0.0
        %vm1039 = vcmp.lt.f32.partialorder %v495, 0.0
        %vm1040 = vcmp.lt.f32.partialorder %v496, 0.0
        %vm1041 = vcmp.lt.f32.partialorder %v497, 0.0
        %vm1042 = vcmp.lt.f32.partialorder %v498, 0.0
        %vm1043 = vcmp.lt.f32.partialorder %v499, 0.0
        %vm1044 = vcmp.lt.f32.partialorder %v500, 0.0
        %v1045 = vsub.f32 0.0, %v1013
        %v1046 = vsub.f32 0.0, %v1014
        %v1047 = vsub.f32 0.0, %v1015
        %v1048 = vsub.f32 0.0, %v1016
        %v1049 = vsub.f32 0.0, %v1017
        %v1050 = vsub.f32 0.0, %v1018
        %v1051 = vsub.f32 0.0, %v1019
        %v1052 = vsub.f32 0.0, %v1020
        %v1053 = vsub.f32 0.0, %v1021
        %v1054 = vsub.f32 0.0, %v1022
        %v1055 = vsub.f32 0.0, %v1023
        %v1056 = vsub.f32 0.0, %v1024
        %v1057 = vsub.f32 0.0, %v1025
        %v1058 = vsub.f32 0.0, %v1026
        %v1059 = vsub.f32 0.0, %v1027
        %v1060 = vsub.f32 0.0, %v1028
        %v1061 = vsel %vm1029, %v1045, %v1013
        %v1062 = vsel %vm1030, %v1046, %v1014
        %v1063 = vsel %vm1031, %v1047, %v1015
        %v1064 = vsel %vm1032, %v1048, %v1016
        %v1065 = vsel %vm1033, %v1049, %v1017
        %v1066 = vsel %vm1034, %v1050, %v1018
        %v1067 = vsel %vm1035, %v1051, %v1019
        %v1068 = vsel %vm1036, %v1052, %v1020
        %v1069 = vsel %vm1037, %v1053, %v1021
        %v1070 = vsel %vm1038, %v1054, %v1022
        %v1071 = vsel %vm1039, %v1055, %v1023
        %v1072 = vsel %vm1040, %v1056, %v1024
        %v1073 = vsel %vm1041, %v1057, %v1025
        %v1074 = vsel %vm1042, %v1058, %v1026
        %v1075 = vsel %vm1043, %v1059, %v1027
        %v1076 = vsel %vm1044, %v1060, %v1028
        %v1077 = vadd.f32 %v1061, 1.0
        %v1078 = vadd.f32 %v1062, 1.0
        %v1079 = vadd.f32 %v1063, 1.0
        %v1080 = vadd.f32 %v1064, 1.0
        %v1081 = vadd.f32 %v1065, 1.0
        %v1082 = vadd.f32 %v1066, 1.0
        %v1083 = vadd.f32 %v1067, 1.0
        %v1084 = vadd.f32 %v1068, 1.0
        %v1085 = vadd.f32 %v1069, 1.0
        %v1086 = vadd.f32 %v1070, 1.0
        %v1087 = vadd.f32 %v1071, 1.0
        %v1088 = vadd.f32 %v1072, 1.0
        %v1089 = vadd.f32 %v1073, 1.0
        %v1090 = vadd.f32 %v1074, 1.0
        %v1091 = vadd.f32 %v1075, 1.0
        %v1092 = vadd.f32 %v1076, 1.0
        %v1093 = vmul.f32 %v469, %v1077
        %v1094 = vmul.f32 %v470, %v1078
        %v1095 = vmul.f32 %v471, %v1079
        %v1096 = vmul.f32 %v472, %v1080
        %v1097 = vmul.f32 %v473, %v1081
        %v1098 = vmul.f32 %v474, %v1082
        %v1099 = vmul.f32 %v475, %v1083
        %v1100 = vmul.f32 %v476, %v1084
        %v1101 = vmul.f32 %v477, %v1085
        %v1102 = vmul.f32 %v478, %v1086
        %v1103 = vmul.f32 %v479, %v1087
        %v1104 = vmul.f32 %v480, %v1088
        %v1105 = vmul.f32 %v481, %v1089
        %v1106 = vmul.f32 %v482, %v1090
        %v1107 = vmul.f32 %v483, %v1091
        %v1108 = vmul.f32 %v484, %v1092
        %v1109 = vld [vmem:[#allocation2] sm:$0xff]
        %v1110 = vld [vmem:[#allocation2 + $0x8] sm:$0xff]
        %v1111 = vld [vmem:[#allocation2 + $0x10] sm:$0xff]
        %v1112 = vld [vmem:[#allocation2 + $0x18] sm:$0xff]
        %v1113 = vld [vmem:[#allocation2 + $0x20] sm:$0xff]
        %v1114 = vld [vmem:[#allocation2 + $0x28] sm:$0xff]
        %v1115 = vld [vmem:[#allocation2 + $0x30] sm:$0xff]
        %v1116 = vld [vmem:[#allocation2 + $0x38] sm:$0xff]
        %v1117 = vld [vmem:[#allocation8] sm:$0xff]
        %v1118 = vld [vmem:[#allocation8 + $0x8] sm:$0xff]
        %v1119 = vld [vmem:[#allocation8 + $0x10] sm:$0xff]
        %v1120 = vld [vmem:[#allocation8 + $0x18] sm:$0xff]
        %v1121 = vld [vmem:[#allocation8 + $0x20] sm:$0xff]
        %v1122 = vld [vmem:[#allocation8 + $0x28] sm:$0xff]
        %v1123 = vld [vmem:[#allocation8 + $0x30] sm:$0xff]
        %v1124 = vld [vmem:[#allocation8 + $0x38] sm:$0xff]
        %v1125 = vld [vmem:[#allocation8 + $0x40] sm:$0xff]
        %v1126 = vld [vmem:[#allocation8 + $0x48] sm:$0xff]
        %v1127 = vld [vmem:[#allocation8 + $0x50] sm:$0xff]
        %v1128 = vld [vmem:[#allocation8 + $0x58] sm:$0xff]
        %v1129 = vld [vmem:[#allocation8 + $0x60] sm:$0xff]
        %v1130 = vld [vmem:[#allocation8 + $0x68] sm:$0xff]
        %v1131 = vld [vmem:[#allocation8 + $0x70] sm:$0xff]
        %v1132 = vld [vmem:[#allocation8 + $0x78] sm:$0xff]
        %v1133 = vld [vmem:[#allocation8 + $0x80] sm:$0xff]
        %v1134 = vld [vmem:[#allocation8 + $0x88] sm:$0xff]
        %v1135 = vld [vmem:[#allocation8 + $0x90] sm:$0xff]
        %v1136 = vld [vmem:[#allocation8 + $0x98] sm:$0xff]
        %v1137 = vld [vmem:[#allocation8 + $0xa0] sm:$0xff]
        %v1138 = vld [vmem:[#allocation8 + $0xa8] sm:$0xff]
        %v1139 = vld [vmem:[#allocation8 + $0xb0] sm:$0xff]
        %v1140 = vld [vmem:[#allocation8 + $0xb8] sm:$0xff]
        %v1141 = vld [vmem:[#allocation8 + $0xc0] sm:$0xff]
        %v1142 = vld [vmem:[#allocation8 + $0xc8] sm:$0xff]
        %v1143 = vld [vmem:[#allocation8 + $0xd0] sm:$0xff]
        %v1144 = vld [vmem:[#allocation8 + $0xd8] sm:$0xff]
        %v1145 = vld [vmem:[#allocation8 + $0xe0] sm:$0xff]
        %v1146 = vld [vmem:[#allocation8 + $0xe8] sm:$0xff]
        %v1147 = vld [vmem:[#allocation8 + $0xf0] sm:$0xff]
        %v1148 = vld [vmem:[#allocation8 + $0xf8] sm:$0xff]
        %1149 = vmatpush.msra.mxu0 %v1132
        %1150 = vmatpush.msra.mxu0 %v1131
        %1151 = vmatpush.msra.mxu0 %v1130
        %1152 = vmatpush.msra.mxu0 %v1129
        %1153 = vmatpush.msra.mxu0 %v1128
        %1154 = vmatpush.msra.mxu0 %v1127
        %1155 = vmatpush.msra.mxu0 %v1126
        %1156 = vmatpush.msra.mxu0 %v1125
        %1157 = vmatpush.msra.mxu0 %v1124
        %1158 = vmatpush.msra.mxu0 %v1123
        %1159 = vmatpush.msra.mxu0 %v1122
        %1160 = vmatpush.msra.mxu0 %v1121
        %1161 = vmatpush.msra.mxu0 %v1120
        %1162 = vmatpush.msra.mxu0 %v1119
        %1163 = vmatpush.msra.mxu0 %v1118
        %1164 = vmatpush.msra.mxu0 %v1117
        %1165 = vmatmul.f32.gmra.mxu0 %v1093
        %v1166 = vpop.f32.mrf.mxu0
        %v1167 = vadd.f32 0.0, %v1166
        %1168 = vmatmul.f32.gmra.mxu0 %v1095
        %v1169 = vpop.f32.mrf.mxu0
        %v1170 = vadd.f32 0.0, %v1169
        %1171 = vmatmul.f32.gmra.mxu0 %v1097
        %v1172 = vpop.f32.mrf.mxu0
        %v1173 = vadd.f32 0.0, %v1172
        %1174 = vmatmul.f32.gmra.mxu0 %v1099
        %v1175 = vpop.f32.mrf.mxu0
        %v1176 = vadd.f32 0.0, %v1175
        %1177 = vmatmul.f32.gmra.mxu0 %v1101
        %v1178 = vpop.f32.mrf.mxu0
        %v1179 = vadd.f32 0.0, %v1178
        %1180 = vmatmul.f32.gmra.mxu0 %v1103
        %v1181 = vpop.f32.mrf.mxu0
        %v1182 = vadd.f32 0.0, %v1181
        %1183 = vmatmul.f32.gmra.mxu0 %v1105
        %v1184 = vpop.f32.mrf.mxu0
        %v1185 = vadd.f32 0.0, %v1184
        %1186 = vmatmul.f32.gmra.mxu0 %v1107
        %v1187 = vpop.f32.mrf.mxu0
        %v1188 = vadd.f32 0.0, %v1187
        %1189 = vdwg.mxu0
        %1190 = vmatpush.msra.mxu0 %v1148
        %1191 = vmatpush.msra.mxu0 %v1147
        %1192 = vmatpush.msra.mxu0 %v1146
        %1193 = vmatpush.msra.mxu0 %v1145
        %1194 = vmatpush.msra.mxu0 %v1144
        %1195 = vmatpush.msra.mxu0 %v1143
        %1196 = vmatpush.msra.mxu0 %v1142
        %1197 = vmatpush.msra.mxu0 %v1141
        %1198 = vmatpush.msra.mxu0 %v1140
        %1199 = vmatpush.msra.mxu0 %v1139
        %1200 = vmatpush.msra.mxu0 %v1138
        %1201 = vmatpush.msra.mxu0 %v1137
        %1202 = vmatpush.msra.mxu0 %v1136
        %1203 = vmatpush.msra.mxu0 %v1135
        %1204 = vmatpush.msra.mxu0 %v1134
        %1205 = vmatpush.msra.mxu0 %v1133
        %1206 = vmatmul.f32.gmra.mxu0 %v1094
        %v1207 = vpop.f32.mrf.mxu0
        %v1208 = vadd.f32 %v1167, %v1207
        %1209 = vmatmul.f32.gmra.mxu0 %v1096
        %v1210 = vpop.f32.mrf.mxu0
        %v1211 = vadd.f32 %v1170, %v1210
        %1212 = vmatmul.f32.gmra.mxu0 %v1098
        %v1213 = vpop.f32.mrf.mxu0
        %v1214 = vadd.f32 %v1173, %v1213
        %1215 = vmatmul.f32.gmra.mxu0 %v1100
        %v1216 = vpop.f32.mrf.mxu0
        %v1217 = vadd.f32 %v1176, %v1216
        %1218 = vmatmul.f32.gmra.mxu0 %v1102
        %v1219 = vpop.f32.mrf.mxu0
        %v1220 = vadd.f32 %v1179, %v1219
        %1221 = vmatmul.f32.gmra.mxu0 %v1104
        %v1222 = vpop.f32.mrf.mxu0
        %v1223 = vadd.f32 %v1182, %v1222
        %1224 = vmatmul.f32.gmra.mxu0 %v1106
        %v1225 = vpop.f32.mrf.mxu0
        %v1226 = vadd.f32 %v1185, %v1225
        %1227 = vmatmul.f32.gmra.mxu0 %v1108
        %v1228 = vpop.f32.mrf.mxu0
        %v1229 = vadd.f32 %v1188, %v1228
        %1230 = vdwg.mxu0
        %v1231 = vadd.f32 %v1109, %v1208
        %v1232 = vadd.f32 %v1110, %v1211
        %v1233 = vadd.f32 %v1111, %v1214
        %v1234 = vadd.f32 %v1112, %v1217
        %v1235 = vadd.f32 %v1113, %v1220
        %v1236 = vadd.f32 %v1114, %v1223
        %v1237 = vadd.f32 %v1115, %v1226
        %v1238 = vadd.f32 %v1116, %v1229
        %1239 = vst [vmem:[#allocation2] sm:$0xff] %v1231
        %1240 = vst [vmem:[#allocation2 + $0x8] sm:$0xff] %v1232
        %1241 = vst [vmem:[#allocation2 + $0x10] sm:$0xff] %v1233
        %1242 = vst [vmem:[#allocation2 + $0x18] sm:$0xff] %v1234
        %1243 = vst [vmem:[#allocation2 + $0x20] sm:$0xff] %v1235
        %1244 = vst [vmem:[#allocation2 + $0x28] sm:$0xff] %v1236
        %1245 = vst [vmem:[#allocation2 + $0x30] sm:$0xff] %v1237
        %1246 = vst [vmem:[#allocation2 + $0x38] sm:$0xff] %v1238
        // Predicated region
        $region57: #{mlp_forward.1} parent=39 // pred_check
          %p1247 = pneg %p329
        $region58: #{mlp_forward.1} parent=39 // pred_check_branch
          %1249 = sbr.rel (%p1247) target = $region60
        $region59: #{mlp_forward.1} parent=39 // pred_region
          %v1250 = vld [vmem:[#allocation2] sm:$0xff]
          %v1251 = vld [vmem:[#allocation2 + $0x8] sm:$0xff]
          %v1252 = vld [vmem:[#allocation2 + $0x10] sm:$0xff]
          %v1253 = vld [vmem:[#allocation2 + $0x18] sm:$0xff]
          %v1254 = vld [vmem:[#allocation2 + $0x20] sm:$0xff]
          %v1255 = vld [vmem:[#allocation2 + $0x28] sm:$0xff]
          %v1256 = vld [vmem:[#allocation2 + $0x30] sm:$0xff]
          %v1257 = vld [vmem:[#allocation2 + $0x38] sm:$0xff]
          %v1258 = vld [vmem:[%s4] sm:$0x1]
          %v1260 = vperm.slane %v1258, 0
          %v1262 = vadd.f32 %v1250, %v1260
          %v1263 = vadd.f32 %v1251, %v1260
          %v1264 = vadd.f32 %v1252, %v1260
          %v1265 = vadd.f32 %v1253, %v1260
          %v1266 = vadd.f32 %v1254, %v1260
          %v1267 = vadd.f32 %v1255, %v1260
          %v1268 = vadd.f32 %v1256, %v1260
          %v1269 = vadd.f32 %v1257, %v1260
          %1270 = vst [vmem:[%s319] sm:$0xff] %v1262
          %1271 = vst [vmem:[%s319 + $0x8] sm:$0xff] %v1263
          %1272 = vst [vmem:[%s319 + $0x10] sm:$0xff] %v1264
          %1273 = vst [vmem:[%s319 + $0x18] sm:$0xff] %v1265
          %1274 = vst [vmem:[%s319 + $0x20] sm:$0xff] %v1266
          %1275 = vst [vmem:[%s319 + $0x28] sm:$0xff] %v1267
          %1276 = vst [vmem:[%s319 + $0x30] sm:$0xff] %v1268
          %1277 = vst [vmem:[%s319 + $0x38] sm:$0xff] %v1269
        $region60: #{mlp_forward.1} parent=39 // pred_fallthru
          _
        %s1278 = sand.u32 %s168, 1
        %s1279 = scalar_lea.sflag [#allocation5], %s1278
        %s1280 = sand.u32 %s168, 1
        %s1281 = smul.addr %s1280, 64
        %s1282 = scalar_lea.vmem [#allocation9], %s1281
        // Predicated region
        $region61: #{mlp_forward.1} parent=39 // pred_check
          %p1283 = pneg %p178
        $region62: #{mlp_forward.1} parent=39 // pred_check_branch
          %1285 = sbr.rel (%p1283) target = $region64
        $region63: #{mlp_forward.1} parent=39 // pred_region
          %s1286 = smul.u32 8, %s27
          %1288 = vsyncadd %s1279, 0
          %s1289 = smul.addr %s1286, 8
          %s1290 = scalar_lea.hbm %s5, %s1289
          %s1291 = sshll.u32 %s1282, 4
          %s1292 = int_to_ptr.vmem [resolvable:$true] %s1291
          %s1293 = sshll.u32 %s1290, 4
          %s1294 = int_to_ptr.hbm [resolvable:$true] %s1293
          %1299 = dma.vmem_to_hbm [thread:$0]  %s1292, 1024, %s1294, %s1279, 128, 128, 8
        $region64: #{mlp_forward.1} parent=39 // pred_fallthru
          _
      $region40: #{mlp_forward.1} parent=5 // pred_fallthru
        _
      %p1300 = scmp.le.s32.totalorder 2, %s18
      // Predicated region
      $region65: #{mlp_forward.1} parent=5 // pred_check
        %p1301 = pneg %p1300
      $region66: #{mlp_forward.1} parent=5 // pred_check_branch
        %1303 = sbr.rel (%p1301) target = $region68
      $region67: #{mlp_forward.1} parent=5 // pred_region
        %s1304 = ssub.s32 %s18, 2
        // Predicated region
        $region69: #{mlp_forward.1} parent=67 // pred_check
          %p1305 = pneg %p184
        $region70: #{mlp_forward.1} parent=67 // pred_check_branch
          %1307 = sbr.rel (%p1305) target = $region72
        $region71: #{mlp_forward.1} parent=67 // pred_region
          %s1308 = sand.u32 %s169, 1
          %s1309 = scalar_lea.sflag [#allocation5], %s1308
          %s1310 = sand.u32 %s169, 1
          %s1311 = smul.addr %s1310, 64
          %s1312 = scalar_lea.vmem [#allocation9], %s1311
          %1314 = dma.done %s1309, 1024
        $region72: #{mlp_forward.1} parent=67 // pred_fallthru
          _
      $region68: #{mlp_forward.1} parent=5 // pred_fallthru
        _
    $region6: #{mlp_forward.1} parent=1 // loop_footer
      %s22 = sadd.s32 1, %s18
    $region7: #{mlp_forward.1} parent=1 // loop_footer_branch
      %17 = sbr.rel target = $region3
    $region8: #{mlp_forward.1} parent=1 // loop_exit
      _
    %1315 = vsyncpa [#allocation4], 1
    %s1316 = scalar_lea.sflag [#allocation4], 1
    %1317 = vsyncpa %s1316, 1
    %1318 = vsyncpa [#allocation7], 1
    %1319 = vsyncpa [#allocation5], 1
    %s1320 = scalar_lea.sflag [#allocation5], 1
    %1321 = vsyncpa %s1320, 1

</llo_original>
